<compile_context>
chip_gen: v6e
topology: v6e:2x2x1
jax: 0.10.0
libtpu: 0.0.40
codegen_flags: <defaults>
</compile_context>

<pallas_src>
import jax
import jax.numpy as jnp
from jax.experimental import pallas as pl
from jax.experimental.pallas import tpu as pltpu

_LANES = 128


def _round_up(x, m):
    return ((x + m - 1) // m) * m


def _mt_ce_kernel(logits_ref, labels_ref, out_ref, sum_ref, cnt_ref):
    i = pl.program_id(0)

    @pl.when(i == 0)
    def _():
        sum_ref[...] = jnp.zeros_like(sum_ref)
        cnt_ref[...] = jnp.zeros_like(cnt_ref)

    x = logits_ref[...].astype(jnp.float32)          # (TR, 128)
    lab = labels_ref[...]                            # (TR, 128) f32; NaN => missing

    # nan_to_num(nan=2) + ignore_index=2  ->  mask out NaN / 2 labels.
    y = jnp.where(jnp.isnan(lab), jnp.float32(2.0), lab)
    valid = (y < 1.5).astype(jnp.float32)            # labels 0/1 count, 2 ignored
    y01 = jnp.where(valid > 0.0, y, jnp.float32(0.0))

    # CE of 2-class logits [0, x]:  softplus(x) - y*x   (numerically stable softplus)
    sp = jnp.maximum(x, 0.0) + jnp.log(1.0 + jnp.exp(-jnp.abs(x)))
    per = valid * (sp - y01 * x)

    # Lane-wise accumulation: only a sublane reduce per step; the cross-lane
    # reduce is deferred to the final step.
    sum_ref[...] += jnp.sum(per, axis=0, keepdims=True)    # (1, 128)
    cnt_ref[...] += jnp.sum(valid, axis=0, keepdims=True)  # (1, 128)

    @pl.when(i == pl.num_programs(0) - 1)
    def _():
        total = jnp.sum(sum_ref[...], keepdims=True)       # (1, 1)
        count = jnp.sum(cnt_ref[...], keepdims=True)       # (1, 1)
        # 0/0 -> NaN when every label is ignored, matching PyTorch CE behaviour.
        out_ref[...] = total / count


def multitask_ce_loss(logits, labels, *, max_block_rows=512):
    """logits: (b, num_tasks) float; labels: (b, num_tasks) float, NaN = missing."""
    b, n = logits.shape
    assert labels.shape == (b, n)
    m = b * n

    rows = pl.cdiv(m, _LANES)
    block_rows = min(max_block_rows, _round_up(rows, 8))
    rows_pad = _round_up(rows, block_rows)
    total = rows_pad * _LANES

    # Lane-dense layout: flatten, pad the tail (padding is masked out because its
    # labels are NaN), reshape so the sample axis maps onto (sublane, lane).
    x_flat = jnp.pad(logits.reshape(-1), (0, total - m))
    lab_flat = jnp.pad(labels.reshape(-1).astype(jnp.float32), (0, total - m),
                       constant_values=jnp.nan)
    x2 = x_flat.reshape(rows_pad, _LANES)            # native dtype; cast in-kernel
    lab2 = lab_flat.reshape(rows_pad, _LANES)

    grid = (rows_pad // block_rows,)
    out = pl.pallas_call(
        _mt_ce_kernel,
        out_shape=jax.ShapeDtypeStruct((1, 1), jnp.float32),
        grid_spec=pltpu.PrefetchScalarGridSpec(
            num_scalar_prefetch=0,
            grid=grid,
            in_specs=[
                pl.BlockSpec((block_rows, _LANES), lambda i: (i, 0)),
                pl.BlockSpec((block_rows, _LANES), lambda i: (i, 0)),
            ],
            out_specs=pl.BlockSpec((1, 1), lambda i: (0, 0)),
            scratch_shapes=[pltpu.VMEM((1, _LANES), jnp.float32),
                            pltpu.VMEM((1, _LANES), jnp.float32)],
        ),
        compiler_params=pltpu.CompilerParams(
            # single reduction axis (resident accumulators) -> "arbitrary"
            dimension_semantics=("arbitrary",)),
    )(x2, lab2)
    return out[0, 0]


def _reference_loss(logits, labels):
    """Plain-JAX reference mirroring the PyTorch module semantics."""
    x = logits.reshape(-1).astype(jnp.float32)
    lab = labels.reshape(-1)
    y = jnp.where(jnp.isnan(lab), 2.0, lab)
    valid = y < 1.5
    y01 = jnp.where(valid, y, 0.0)
    per = jnp.logaddexp(0.0, x) - y01 * x            # CE of [0, x] vs label y
    s = jnp.sum(jnp.where(valid, per, 0.0))
    c = jnp.sum(valid.astype(jnp.float32))
    return s / c


if __name__ == "__main__":
    key = jax.random.PRNGKey(0)
    k1, k2, k3 = jax.random.split(key, 3)

    b, num_tasks = 8, 4
    logits = jax.random.normal(k1, (b, num_tasks), dtype=jnp.float32)
    lab01 = jax.random.bernoulli(k2, 0.5, (b, num_tasks)).astype(jnp.float32)
    nan_mask = jax.random.bernoulli(k3, 0.25, (b, num_tasks))
    labels = jnp.where(nan_mask, jnp.nan, lab01)     # NaN = missing task label

    out = multitask_ce_loss(logits, labels)
    out = jax.block_until_ready(out)

    ref = _reference_loss(logits, labels)
    assert jnp.allclose(out, ref, atol=1e-5, rtol=1e-5), (out, ref)

    print("KERNEL_OK")
</pallas_src>

<mosaic_0001>
module attributes {stable_mosaic.version = 11 : i64} {
  func.func @_mt_ce_kernel(%arg0: i32, %arg1: memref<8x128xf32, #tpu.memory_space<vmem>>, %arg2: memref<8x128xf32, #tpu.memory_space<vmem>>, %arg3: memref<1x1xf32, #tpu.memory_space<vmem>>, %arg4: memref<1x128xf32, #tpu.memory_space<vmem>>, %arg5: memref<1x128xf32, #tpu.memory_space<vmem>>) attributes {dimension_semantics = [#tpu.dimension_semantics<arbitrary>], iteration_bounds = array<i64: 1>, scalar_prefetch = 0 : i64, scratch_operands = 2 : i64, tpu.core_type = #tpu.core_type<tc>, window_params = [{transform_indices = @transform_0, window_bounds = array<i64: 8, 128>}, {transform_indices = @transform_1, window_bounds = array<i64: 8, 128>}, {pipeline_mode = #tpu.pipeline_mode<synchronous>, transform_indices = @transform_2, window_bounds = array<i64: 1, 1>}]} {
    %c0_i32 = arith.constant 0 : i32
    %0 = arith.cmpi eq, %arg0, %c0_i32 : i32
    %1 = arith.extui %0 : i1 to i32
    %c0_i32_0 = arith.constant 0 : i32
    %2 = arith.cmpi ne, %1, %c0_i32_0 : i32
    scf.if %2 {
      %cst_22 = arith.constant 0.000000e+00 : f32
      %42 = vector.broadcast %cst_22 : f32 to vector<1x128xf32>
      %c0_23 = arith.constant 0 : index
      %c0_24 = arith.constant 0 : index
      %43 = vector.load %arg4[%c0_23, %c0_24] : memref<1x128xf32, #tpu.memory_space<vmem>>, vector<1x128xf32>
      tpu.vector_store %arg4[%c0_23, %c0_24], %42 {strides = array<i32>} : memref<1x128xf32, #tpu.memory_space<vmem>>, vector<1x128xf32>,
      %cst_25 = arith.constant 0.000000e+00 : f32
      %44 = vector.broadcast %cst_25 : f32 to vector<1x128xf32>
      %c0_26 = arith.constant 0 : index
      %c0_27 = arith.constant 0 : index
      %45 = vector.load %arg5[%c0_26, %c0_27] : memref<1x128xf32, #tpu.memory_space<vmem>>, vector<1x128xf32>
      tpu.vector_store %arg5[%c0_26, %c0_27], %44 {strides = array<i32>} : memref<1x128xf32, #tpu.memory_space<vmem>>, vector<1x128xf32>,
    } else {
    }
    %c0 = arith.constant 0 : index
    %c0_1 = arith.constant 0 : index
    %3 = vector.load %arg1[%c0, %c0_1] : memref<8x128xf32, #tpu.memory_space<vmem>>, vector<8x128xf32>
    %c0_2 = arith.constant 0 : index
    %c0_3 = arith.constant 0 : index
    %4 = vector.load %arg2[%c0_2, %c0_3] : memref<8x128xf32, #tpu.memory_space<vmem>>, vector<8x128xf32>
    %5 = arith.cmpf one, %4, %4 : vector<8x128xf32>
    %cst = arith.constant 2.000000e+00 : f32
    %6 = vector.broadcast %cst : f32 to vector<8x128xf32>
    %7 = arith.select %5, %6, %4 : vector<8x128xi1>, vector<8x128xf32>
    %cst_4 = arith.constant 1.500000e+00 : f32
    %8 = vector.broadcast %cst_4 : f32 to vector<8x128xf32>
    %9 = arith.cmpf olt, %7, %8 : vector<8x128xf32>
    %10 = arith.extui %9 : vector<8x128xi1> to vector<8x128xi32>
    %11 = arith.sitofp %10 : vector<8x128xi32> to vector<8x128xf32>
    %cst_5 = arith.constant 0.000000e+00 : f32
    %12 = vector.broadcast %cst_5 : f32 to vector<8x128xf32>
    %13 = arith.cmpf ogt, %11, %12 : vector<8x128xf32>
    %cst_6 = arith.constant 0.000000e+00 : f32
    %14 = vector.broadcast %cst_6 : f32 to vector<8x128xf32>
    %15 = arith.select %13, %7, %14 : vector<8x128xi1>, vector<8x128xf32>
    %cst_7 = arith.constant 0.000000e+00 : f32
    %16 = vector.broadcast %cst_7 : f32 to vector<8x128xf32>
    %17 = arith.maximumf %3, %16 : vector<8x128xf32>
    %18 = math.absf %3 : vector<8x128xf32>
    %cst_8 = arith.constant 0.000000e+00 : f32
    %19 = vector.broadcast %cst_8 : f32 to vector<8x128xf32>
    %20 = arith.subf %19, %18 : vector<8x128xf32>
    %21 = math.exp %20 : vector<8x128xf32>
    %cst_9 = arith.constant 1.000000e+00 : f32
    %22 = vector.broadcast %cst_9 : f32 to vector<8x128xf32>
    %23 = arith.addf %22, %21 : vector<8x128xf32>
    %24 = math.log %23 : vector<8x128xf32>
    %25 = arith.addf %17, %24 : vector<8x128xf32>
    %26 = arith.mulf %15, %3 : vector<8x128xf32>
    %27 = arith.subf %25, %26 : vector<8x128xf32>
    %28 = arith.mulf %11, %27 : vector<8x128xf32>
    %c0_10 = arith.constant 0 : index
    %c0_11 = arith.constant 0 : index
    %29 = vector.load %arg4[%c0_10, %c0_11] : memref<1x128xf32, #tpu.memory_space<vmem>>, vector<1x128xf32>
    %cst_12 = arith.constant dense<0.000000e+00> : vector<128xf32>
    %30 = vector.multi_reduction <add>, %28, %cst_12 [0] : vector<8x128xf32> to vector<128xf32>
    %31 = vector.shape_cast %30 : vector<128xf32> to vector<1x128xf32>
    %32 = arith.addf %29, %31 : vector<1x128xf32>
    %c0_13 = arith.constant 0 : index
    %c0_14 = arith.constant 0 : index
    %33 = vector.load %arg4[%c0_13, %c0_14] : memref<1x128xf32, #tpu.memory_space<vmem>>, vector<1x128xf32>
    tpu.vector_store %arg4[%c0_13, %c0_14], %32 {strides = array<i32>} : memref<1x128xf32, #tpu.memory_space<vmem>>, vector<1x128xf32>,
    %c0_15 = arith.constant 0 : index
    %c0_16 = arith.constant 0 : index
    %34 = vector.load %arg5[%c0_15, %c0_16] : memref<1x128xf32, #tpu.memory_space<vmem>>, vector<1x128xf32>
    %cst_17 = arith.constant dense<0.000000e+00> : vector<128xf32>
    %35 = vector.multi_reduction <add>, %11, %cst_17 [0] : vector<8x128xf32> to vector<128xf32>
    %36 = vector.shape_cast %35 : vector<128xf32> to vector<1x128xf32>
    %37 = arith.addf %34, %36 : vector<1x128xf32>
    %c0_18 = arith.constant 0 : index
    %c0_19 = arith.constant 0 : index
    %38 = vector.load %arg5[%c0_18, %c0_19] : memref<1x128xf32, #tpu.memory_space<vmem>>, vector<1x128xf32>
    tpu.vector_store %arg5[%c0_18, %c0_19], %37 {strides = array<i32>} : memref<1x128xf32, #tpu.memory_space<vmem>>, vector<1x128xf32>,
    %c0_i32_20 = arith.constant 0 : i32
    %39 = arith.cmpi eq, %arg0, %c0_i32_20 : i32
    %40 = arith.extui %39 : i1 to i32
    %c0_i32_21 = arith.constant 0 : i32
    %41 = arith.cmpi ne, %40, %c0_i32_21 : i32
    scf.if %41 {
      %c0_22 = arith.constant 0 : index
      %c0_23 = arith.constant 0 : index
      %42 = vector.load %arg4[%c0_22, %c0_23] : memref<1x128xf32, #tpu.memory_space<vmem>>, vector<1x128xf32>
      %43 = vector.shape_cast %42 : vector<1x128xf32> to vector<1x1x128xf32>
      %cst_24 = arith.constant dense<0.000000e+00> : vector<1xf32>
      %44 = vector.multi_reduction <add>, %43, %cst_24 [1, 2] : vector<1x1x128xf32> to vector<1xf32>
      %45 = vector.shape_cast %44 : vector<1xf32> to vector<1x1x1xf32>
      %46 = vector.extract %45[0, 0, 0] : f32 from vector<1x1x1xf32>
      %47 = vector.broadcast %46 : f32 to vector<1x1xf32>
      %c0_25 = arith.constant 0 : index
      %c0_26 = arith.constant 0 : index
      %48 = vector.load %arg5[%c0_25, %c0_26] : memref<1x128xf32, #tpu.memory_space<vmem>>, vector<1x128xf32>
      %49 = vector.shape_cast %48 : vector<1x128xf32> to vector<1x1x128xf32>
      %cst_27 = arith.constant dense<0.000000e+00> : vector<1xf32>
      %50 = vector.multi_reduction <add>, %49, %cst_27 [1, 2] : vector<1x1x128xf32> to vector<1xf32>
      %51 = vector.shape_cast %50 : vector<1xf32> to vector<1x1x1xf32>
      %52 = vector.extract %51[0, 0, 0] : f32 from vector<1x1x1xf32>
      %53 = vector.broadcast %52 : f32 to vector<1x1xf32>
      %54 = arith.divf %47, %53 : vector<1x1xf32>
      %c0_28 = arith.constant 0 : index
      %c0_29 = arith.constant 0 : index
      %55 = vector.load %arg3[%c0_28, %c0_29] : memref<1x1xf32, #tpu.memory_space<vmem>>, vector<1x1xf32>
      tpu.vector_store %arg3[%c0_28, %c0_29], %54 {strides = array<i32>} : memref<1x1xf32, #tpu.memory_space<vmem>>, vector<1x1xf32>,
    } else {
    }
    return
  }
  func.func @transform_0(%arg0: i32) -> (i32, i32) {
    %c0_i32 = arith.constant 0 : i32
    %c0_i32_0 = arith.constant 0 : i32
    return %arg0, %c0_i32 : i32, i32
  }
  func.func @transform_1(%arg0: i32) -> (i32, i32) {
    %c0_i32 = arith.constant 0 : i32
    %c0_i32_0 = arith.constant 0 : i32
    return %arg0, %c0_i32 : i32, i32
  }
  func.func @transform_2(%arg0: i32) -> (i32, i32) {
    %c0_i32 = arith.constant 0 : i32
    %c0_i32_0 = arith.constant 0 : i32
    %c0_i32_1 = arith.constant 0 : i32
    return %c0_i32, %c0_i32_0 : i32, i32
  }
}

</mosaic_0001>

<llo_original>
// kernel: tpu_custom_call.1
$region0: #{tpu_custom_call.1}
  #allocation0 [shape = 'u32[]', space=smem, size = 0x4, offset = 0x4, fixed_abs, tag = 'smem constant byte address 0x4 - core index']
  #allocation1 [shape = 'u32[144,128]{1,0:T(1,128)}', space=vmem, size = 0x12000, scoped, tag = 'internal scratch']
  #allocation2 [shape = 'f32[1,128]{1,0:T(1,128)}', space=vmem, size = 0x200, scoped, tag = 'scratch operand']
  #allocation3 [shape = 'f32[1,128]{1,0:T(1,128)}', space=vmem, size = 0x200, scoped, tag = 'scratch operand']
  %s0 = inlined_call_operand.hbm [shape: f32[8,128], index: 0, kind: input, shape index: {}]
  %s1 = inlined_call_operand.hbm [shape: f32[8,128], index: 1, kind: input, shape index: {}]
  %s2 = inlined_call_operand.hbm [shape: f32[1,1], index: 2, kind: output, shape index: {}]
  %s3 = sld [smem:[#allocation0]]
  $region34: #{tpu_custom_call.1} parent=0
    _
  %s5 = ssub.s32 1, %s3
  %s6 = scalar_select 0, %s5, %s3
  $region1: #{tpu_custom_call.1} parent=0
    #allocation4 [shape = 'u8[4096]{0}', space=vmem, size = 0x1000, scoped, tag = 'input window, operand 0, single buffered']
    #allocation5 [shape = 's32[1]{0}', space=sflag, size = 0x4, scoped, tag = 'scoped memory for tpu_custom_call.1']
    #allocation6 [shape = 's32[1]{0}', space=sflag, size = 0x4, scoped, tag = 'scoped memory for tpu_custom_call.1']
    #allocation7 [shape = 'u8[4096]{0}', space=vmem, size = 0x1000, scoped, tag = 'input window, operand 1, single buffered']
    #allocation8 [shape = 's32[1]{0}', space=sflag, size = 0x4, scoped, tag = 'scoped memory for tpu_custom_call.1']
    #allocation9 [shape = 'u8[512]{0}', space=vmem, size = 0x400, scoped, tag = 'output window, operand 0, single buffered']
    %7 = vsyncpa [#allocation5], 0
    %8 = vsyncpa [#allocation8], 0
    %9 = vsyncpa [#allocation6], 0
    // Predicated region
    $region2: #{tpu_custom_call.1} parent=1 // pred_check
      _
    $region3: #{tpu_custom_call.1} parent=1 // pred_check_branch
      %11 = sbr.rel (0) target = $region5
    $region4: #{tpu_custom_call.1} parent=1 // pred_region
      %s13 = ssub.s32 128, 128
      %14 = vsyncadd [#allocation5], %s13
      %s16 = sshll.u32 [#allocation4], 4
      %s17 = int_to_ptr.vmem [resolvable:$true] %s16
      %19 = dma.hbm_to_vmem [thread:$0]  %s0, 128, %s17, [#allocation5]
    $region5: #{tpu_custom_call.1} parent=1 // pred_fallthru
      _
    // Predicated region
    $region6: #{tpu_custom_call.1} parent=1 // pred_check
      _
    $region7: #{tpu_custom_call.1} parent=1 // pred_check_branch
      %21 = sbr.rel (0) target = $region9
    $region8: #{tpu_custom_call.1} parent=1 // pred_region
      %s23 = ssub.s32 128, 128
      %24 = vsyncadd [#allocation8], %s23
      %s26 = sshll.u32 [#allocation7], 4
      %s27 = int_to_ptr.vmem [resolvable:$true] %s26
      %29 = dma.hbm_to_vmem [thread:$0]  %s1, 128, %s27, [#allocation8]
    $region9: #{tpu_custom_call.1} parent=1 // pred_fallthru
      _
    // Predicated region
    $region10: #{tpu_custom_call.1} parent=1 // pred_check
      _
    $region11: #{tpu_custom_call.1} parent=1 // pred_check_branch
      %31 = sbr.rel (0) target = $region13
    $region12: #{tpu_custom_call.1} parent=1 // pred_region
      %32 = dma.done [#allocation5], 128
    $region13: #{tpu_custom_call.1} parent=1 // pred_fallthru
      _
    // Predicated region
    $region14: #{tpu_custom_call.1} parent=1 // pred_check
      _
    $region15: #{tpu_custom_call.1} parent=1 // pred_check_branch
      %34 = sbr.rel (0) target = $region17
    $region16: #{tpu_custom_call.1} parent=1 // pred_region
      %35 = dma.done [#allocation8], 128
    $region17: #{tpu_custom_call.1} parent=1 // pred_fallthru
      _
    %p36 = scmp.eq.s32.totalorder 0, 0
    // Predicated region
    $region18: #{tpu_custom_call.1} parent=1 // pred_check
      %p37 = pneg %p36
    $region19: #{tpu_custom_call.1} parent=1 // pred_check_branch
      %39 = sbr.rel (%p37) target = $region21
    $region20: #{tpu_custom_call.1} parent=1 // pred_region
      %40 = vst [vmem:[#allocation2] sm:$0x1] 0.0
      %41 = vst [vmem:[#allocation3] sm:$0x1] 0.0
    $region21: #{tpu_custom_call.1} parent=1 // pred_fallthru
      _
    %v42 = vld [vmem:[#allocation4] sm:$0xff]
    %v43 = vld [vmem:[#allocation7] sm:$0xff]
    %vm44 = vcmp.ne.f32.partialorder %v43, %v43
    %v45 = vsel %vm44, 2.0, %v43
    %vm46 = vcmp.lt.f32.partialorder %v45, 1.5
    %v47 = vsel %vm46, 1, 0
    %v48 = vcvt.s32.f32 %v47
    %vm49 = vcmp.gt.f32.partialorder %v48, 0.0
    %v50 = vsel %vm49, %v45, 0.0
    %v51 = vmax.f32 %v42, 0.0
    %v52 = vand.u32 2147483647, %v42
    %v53 = vsub.f32 0.0, %v52
    %v54 = vmul.f32 %v53, 1.442695
    %v55 = vpow.pop %v54
    %v56 = vadd.f32 %v55, 1.0
    %v57 = vlog2.pop %v56
    %v58 = vmul.f32 %v57, 0.6931472
    %v59 = vadd.f32 %v51, %v58
    %v60 = vmul.f32 %v50, %v42
    %v61 = vsub.f32 %v59, %v60
    %v62 = vmul.f32 %v48, %v61
    %v63 = vld [vmem:[#allocation2] sm:$0x1]
    %v64 = vrot.slane %v62, 4
    %v65 = vadd.f32 %v62, %v64
    %v66 = vrot.slane %v65, 2
    %v67 = vadd.f32 %v65, %v66
    %v68 = vrot.slane %v67, 1
    %v69 = vadd.f32 %v67, %v68
    %v70 = vadd.f32 %v63, %v69
    %71 = vst [vmem:[#allocation2] sm:$0x1] %v70
    %v72 = vld [vmem:[#allocation3] sm:$0x1]
    %v73 = vrot.slane %v48, 4
    %v74 = vadd.f32 %v48, %v73
    %v75 = vrot.slane %v74, 2
    %v76 = vadd.f32 %v74, %v75
    %v77 = vrot.slane %v76, 1
    %v78 = vadd.f32 %v76, %v77
    %v79 = vadd.f32 %v72, %v78
    %80 = vst [vmem:[#allocation3] sm:$0x1] %v79
    // Predicated region
    $region22: #{tpu_custom_call.1} parent=1 // pred_check
      %p81 = pneg %p36
    $region23: #{tpu_custom_call.1} parent=1 // pred_check_branch
      %83 = sbr.rel (%p81) target = $region25
    $region24: #{tpu_custom_call.1} parent=1 // pred_region
      %v84 = vld [vmem:[#allocation2] sm:$0x1]
      %vm85 = vcmask 1040384
      %v86 = vsel %vm85, %v84, 0.0
      %87 = vadd.xlane.f32.xlu0 %v86
      %v88 = vpop.xlane.xlu0 %87
      %v89 = vrot.slane %v88, 4
      %v90 = vadd.f32 %v88, %v89
      %v91 = vrot.slane %v90, 2
      %v92 = vadd.f32 %v90, %v91
      %v93 = vrot.slane %v92, 1
      %v94 = vadd.f32 %v92, %v93
      %s95 = vtos %v94
      %v96 = vstv %s95
      %v97 = vld [vmem:[#allocation3] sm:$0x1]
      %v98 = vsel %vm85, %v97, 0.0
      %99 = vadd.xlane.f32.xlu0 %v98
      %v100 = vpop.xlane.xlu0 %99
      %v101 = vrot.slane %v100, 4
      %v102 = vadd.f32 %v100, %v101
      %v103 = vrot.slane %v102, 2
      %v104 = vadd.f32 %v102, %v103
      %v105 = vrot.slane %v104, 1
      %v106 = vadd.f32 %v104, %v105
      %s107 = vtos %v106
      %v108 = vstv %s107
      %v109 = vrcp.pop %v108
      %v110 = vmul.f32 %v96, %v109
      %vm111 = vcmask 0
      %112 = vst.msk [vmem:[#allocation9] sm:$0x1] %vm111, %v110
    $region25: #{tpu_custom_call.1} parent=1 // pred_fallthru
      _
    // Predicated region
    $region26: #{tpu_custom_call.1} parent=1 // pred_check
      _
    $region27: #{tpu_custom_call.1} parent=1 // pred_check_branch
      %114 = sbr.rel (0) target = $region29
    $region28: #{tpu_custom_call.1} parent=1 // pred_region
      %s116 = ssub.s32 16, 16
      %117 = vsyncadd [#allocation6], %s116
      %s119 = sshll.u32 [#allocation9], 4
      %s120 = int_to_ptr.vmem [resolvable:$true] %s119
      %122 = dma.vmem_to_hbm [thread:$0]  %s120, 16, %s2, [#allocation6]
    $region29: #{tpu_custom_call.1} parent=1 // pred_fallthru
      _
    // Predicated region
    $region30: #{tpu_custom_call.1} parent=1 // pred_check
      _
    $region31: #{tpu_custom_call.1} parent=1 // pred_check_branch
      %124 = sbr.rel (0) target = $region33
    $region32: #{tpu_custom_call.1} parent=1 // pred_region
      %125 = dma.done [#allocation6], 16
    $region33: #{tpu_custom_call.1} parent=1 // pred_fallthru
      _
    %126 = vsyncpa [#allocation5], 1
    %127 = vsyncpa [#allocation8], 1
    %128 = vsyncpa [#allocation6], 1

</llo_original>
